<compile_context>
chip_gen: v6e
topology: v6e:2x2x1
jax: 0.10.0
libtpu: 0.0.40
codegen_flags: <defaults>
</compile_context>

<pallas_src>
import functools
import math

import jax
import jax.numpy as jnp
from jax import lax
from jax.experimental import pallas as pl
from jax.experimental.pallas import tpu as pltpu

_LN_EPS = 1e-12
# 48 MiB is safe on every generation (v7x has only 64 MiB physical VMEM).
# On v5e / v6e (128 MiB) this can be raised to ~96 MiB together with larger
# dense-matmul tiles (tm=tn=512, tk=1024).
_VMEM_LIMIT = 48 * 1024 * 1024
_SQRT_2_OVER_PI = 0.7978845608028654


def _round_up(x, m):
    return ((x + m - 1) // m) * m


def _fit(dim, target):
    """Largest divisor of `dim` <= target, preferring multiples of 128, then 8.

    Dimensions with no usable divisor (e.g. a raw vocab size) must be padded by
    the caller before reaching a pallas_call (the vocab is padded to a multiple
    of 128 in prepare_params)."""
    if dim <= target:
        return dim
    for step in (128, 8, 1):
        t = (target // step) * step
        while t >= step:
            if dim % t == 0:
                return t
            t -= step
    return dim


def _gelu_tanh(x):
    # tanh-approx GELU: tanh goes to the EUP slot (idle in the matmul epilogue).
    return 0.5 * x * (1.0 + jnp.tanh(_SQRT_2_OVER_PI * (x + 0.044715 * x * x * x)))


# ----------------------- fused matmul (+bias[+gelu]) -----------------------

def _matmul_bias_kernel(x_ref, w_ref, b_ref, o_ref, acc_ref, *, activation):
    k = pl.program_id(2)

    @pl.when(k == 0)
    def _init():
        acc_ref[...] = jnp.zeros_like(acc_ref)

    acc_ref[...] += jnp.dot(x_ref[...], w_ref[...],
                            preferred_element_type=jnp.float32)

    @pl.when(k == pl.num_programs(2) - 1)
    def _fin():
        y = acc_ref[...] + b_ref[...]
        if activation == "gelu":
            y = _gelu_tanh(y)
        o_ref[...] = y.astype(o_ref.dtype)


def fused_linear(x, w, b, *, activation=None, out_dtype=jnp.bfloat16,
                 tm=256, tn=512, tk=512):
    """out = act(x @ w + b). x/w bf16, b f32 (1, N), f32 accumulation."""
    M, K = x.shape
    _, N = w.shape
    tm, tn, tk = _fit(M, tm), _fit(N, tn), _fit(K, tk)
    grid = (M // tm, N // tn, K // tk)
    return pl.pallas_call(
        functools.partial(_matmul_bias_kernel, activation=activation),
        out_shape=jax.ShapeDtypeStruct((M, N), out_dtype),
        grid=grid,
        in_specs=[
            pl.BlockSpec((tm, tk), lambda i, j, k: (i, k)),
            pl.BlockSpec((tk, tn), lambda i, j, k: (k, j)),
            pl.BlockSpec((1, tn), lambda i, j, k: (0, j)),
        ],
        out_specs=pl.BlockSpec((tm, tn), lambda i, j, k: (i, j)),
        scratch_shapes=[pltpu.VMEM((tm, tn), jnp.float32)],
        compiler_params=pltpu.CompilerParams(
            dimension_semantics=("parallel", "parallel", "arbitrary"),
            vmem_limit_bytes=_VMEM_LIMIT),
        cost_estimate=pl.CostEstimate(
            flops=2 * M * K * N,
            transcendentals=(M * N if activation == "gelu" else 0),
            bytes_accessed=(M * K * 2 + K * N * 2
                            + M * N * jnp.dtype(out_dtype).itemsize)),
    )(x, w, b)


# ---------------- fused matmul + bias + residual + LayerNorm ----------------

def _matmul_bias_res_ln_kernel(x_ref, w_ref, b_ref, r_ref, g_ref, bt_ref,
                               o_ref, acc_ref, *, eps):
    k = pl.program_id(1)

    @pl.when(k == 0)
    def _init():
        acc_ref[...] = jnp.zeros_like(acc_ref)

    acc_ref[...] += jnp.dot(x_ref[...], w_ref[...],
                            preferred_element_type=jnp.float32)

    @pl.when(k == pl.num_programs(1) - 1)
    def _fin():
        y = acc_ref[...] + b_ref[...] + r_ref[...].astype(jnp.float32)
        mean = jnp.mean(y, axis=-1, keepdims=True)
        var = jnp.mean((y - mean) ** 2, axis=-1, keepdims=True)
        o_ref[...] = ((y - mean) * lax.rsqrt(var + eps) * g_ref[...]
                      + bt_ref[...]).astype(o_ref.dtype)


def fused_linear_ln(x, w, b, *, residual, gamma, beta, eps=_LN_EPS,
                    out_dtype=jnp.bfloat16, tm=256, tk=512):
    """LayerNorm((x @ w + b) + residual); residual stream stays bf16."""
    M, K = x.shape
    _, N = w.shape
    tm, tk = _fit(M, tm), _fit(K, tk)
    grid = (M // tm, K // tk)
    return pl.pallas_call(
        functools.partial(_matmul_bias_res_ln_kernel, eps=eps),
        out_shape=jax.ShapeDtypeStruct((M, N), out_dtype),
        grid=grid,
        in_specs=[
            pl.BlockSpec((tm, tk), lambda i, k: (i, k)),
            pl.BlockSpec((tk, N), lambda i, k: (k, 0)),
            pl.BlockSpec((1, N), lambda i, k: (0, 0)),
            pl.BlockSpec((tm, N), lambda i, k: (i, 0)),     # bf16 residual, resident
            pl.BlockSpec((1, N), lambda i, k: (0, 0)),
            pl.BlockSpec((1, N), lambda i, k: (0, 0)),
        ],
        out_specs=pl.BlockSpec((tm, N), lambda i, k: (i, 0)),
        scratch_shapes=[pltpu.VMEM((tm, N), jnp.float32)],
        compiler_params=pltpu.CompilerParams(
            dimension_semantics=("parallel", "arbitrary"),
            vmem_limit_bytes=_VMEM_LIMIT),
        cost_estimate=pl.CostEstimate(
            flops=2 * M * K * N, transcendentals=0,
            bytes_accessed=(M * K * 2 + K * N * 2 + 2 * M * N * 2)),
    )(x, w, b, residual, gamma, beta)


# ------------------------------- LayerNorm ---------------------------------

def _ln_kernel(x_ref, g_ref, b_ref, o_ref, *, eps):
    y = x_ref[...].astype(jnp.float32)
    mean = jnp.mean(y, axis=-1, keepdims=True)
    var = jnp.mean((y - mean) ** 2, axis=-1, keepdims=True)
    o_ref[...] = ((y - mean) * lax.rsqrt(var + eps) * g_ref[...]
                  + b_ref[...]).astype(o_ref.dtype)


def layernorm(x, gamma, beta, *, eps=_LN_EPS, out_dtype=jnp.bfloat16, tm=512):
    M, D = x.shape
    tm = _fit(M, tm)
    return pl.pallas_call(
        functools.partial(_ln_kernel, eps=eps),
        out_shape=jax.ShapeDtypeStruct((M, D), out_dtype),
        grid=(M // tm,),
        in_specs=[
            pl.BlockSpec((tm, D), lambda i: (i, 0)),
            pl.BlockSpec((1, D), lambda i: (0, 0)),
            pl.BlockSpec((1, D), lambda i: (0, 0)),
        ],
        out_specs=pl.BlockSpec((tm, D), lambda i: (i, 0)),
        compiler_params=pltpu.CompilerParams(
            dimension_semantics=("parallel",),
            vmem_limit_bytes=_VMEM_LIMIT),
    )(x, gamma, beta)


# ---------------- QKV projection writing attention layout -------------------

def _qkv_head_kernel(x_ref, w_ref, b_ref, o_ref):
    o_ref[0, 0] = (jnp.dot(x_ref[...], w_ref[0],
                           preferred_element_type=jnp.float32)
                   + b_ref[0]).astype(o_ref.dtype)


def qkv_project(x, wqkv, bqkv, *, B, S, tm=256):
    """x: [B*S, D] bf16; wqkv: [3H, D, dh] bf16 (Q pre-scaled); bqkv: [3H,1,dh] f32.

    Returns [3H, B, S, dh] bf16 — head-leading layout consumed directly by the
    attention kernel (no XLA slab slicing / transposes). The x row strip stays
    VMEM-resident across the 3H weight steps."""
    M, D = x.shape
    three_h, _, dh = wqkv.shape
    tm = _fit(S, tm)                 # row tile must not cross a batch boundary
    st = S // tm
    grid = (M // tm, three_h)
    # TODO(synk): add a K loop for very large D if the (tm, D) x strip stops
    #             fitting comfortably in VMEM.
    return pl.pallas_call(
        _qkv_head_kernel,
        out_shape=jax.ShapeDtypeStruct((three_h, B, S, dh), jnp.bfloat16),
        grid=grid,
        in_specs=[
            pl.BlockSpec((tm, D), lambda i, j: (i, 0)),         # resident over j
            pl.BlockSpec((1, D, dh), lambda i, j: (j, 0, 0)),
            pl.BlockSpec((1, 1, dh), lambda i, j: (j, 0, 0)),
        ],
        out_specs=pl.BlockSpec((1, 1, tm, dh),
                               lambda i, j: (j, i // st, i % st, 0)),
        compiler_params=pltpu.CompilerParams(
            dimension_semantics=("parallel", "arbitrary"),
            vmem_limit_bytes=_VMEM_LIMIT),
        cost_estimate=pl.CostEstimate(
            flops=2 * M * D * three_h * dh, transcendentals=0,
            bytes_accessed=(M * D * 2 + three_h * D * dh * 2
                            + M * three_h * dh * 2)),
    )(x, wqkv, bqkv)


# ------------------------ vocab (logits) projection -------------------------

def _linear_xresident_kernel(x_ref, w_ref, b_ref, o_ref):
    o_ref[...] = (jnp.dot(x_ref[...], w_ref[...],
                          preferred_element_type=jnp.float32)
                  + b_ref[...]).astype(o_ref.dtype)


def vocab_projection(x, w, b, *, out_dtype=jnp.float32, tm=256, tn=512):
    """Full-K contraction; x strip stays VMEM-resident across vocab tiles."""
    M, K = x.shape
    _, N = w.shape
    tm, tn = _fit(M, tm), _fit(N, tn)
    grid = (M // tm, N // tn)
    return pl.pallas_call(
        _linear_xresident_kernel,
        out_shape=jax.ShapeDtypeStruct((M, N), out_dtype),
        grid=grid,
        in_specs=[
            pl.BlockSpec((tm, K), lambda i, j: (i, 0)),         # resident over j
            pl.BlockSpec((K, tn), lambda i, j: (0, j)),
            pl.BlockSpec((1, tn), lambda i, j: (0, j)),
        ],
        out_specs=pl.BlockSpec((tm, tn), lambda i, j: (i, j)),
        compiler_params=pltpu.CompilerParams(
            dimension_semantics=("parallel", "arbitrary"),
            vmem_limit_bytes=_VMEM_LIMIT),
        cost_estimate=pl.CostEstimate(
            flops=2 * M * K * N, transcendentals=0,
            bytes_accessed=(M * K * 2 + K * N * 2 + M * N * 4)),
    )(x, w, b)


# --------------------- flash-style banded Longformer attn -------------------

def build_attention_schedule(global_mask, *, S, tq, tkv, half_window):
    """Per-(batch, q-tile) kv-tile visitation table: needed tiles (band +
    global-key tiles + all tiles for global-query tiles) first, padded by
    repeating the last needed tile (repeat => no extra K/V DMA)."""
    B = global_mask.shape[0]
    nq, nk = S // tq, S // tkv
    g = global_mask.astype(jnp.int32)
    q_any = g.reshape(B, nq, tq).sum(-1) > 0               # q tile has a global query
    k_any = g.reshape(B, nk, tkv).sum(-1) > 0              # kv tile has a global key
    qi = jnp.arange(nq, dtype=jnp.int32)
    ki = jnp.arange(nk, dtype=jnp.int32)
    q_lo = qi * tq - half_window
    q_hi = qi * tq + (tq - 1) + half_window
    band = ((ki[None, :] * tkv) <= q_hi[:, None]) & \
           ((ki[None, :] * tkv + (tkv - 1)) >= q_lo[:, None])          # (nq, nk)
    needed = band[None, :, :] | k_any[:, None, :] | q_any[:, :, None]  # (B, nq, nk)
    order = jnp.argsort((~needed).astype(jnp.int32), axis=-1,
                        stable=True).astype(jnp.int32)
    count = needed.sum(-1).astype(jnp.int32)               # >= 1 (diagonal band tile)
    last = jnp.take_along_axis(order, jnp.maximum(count - 1, 0)[..., None], axis=-1)
    steps = jnp.arange(nk, dtype=jnp.int32)
    table = jnp.where(steps[None, None, :] < count[..., None], order, last)
    return table.reshape(-1).astype(jnp.int32), count.reshape(-1).astype(jnp.int32)


def _flash_band_attn_kernel(tbl_ref, cnt_ref,
                            q_ref, k_ref, v_ref, gq_ref, gk_ref, kp_ref,
                            o_ref, m_sc, l_sc, acc_sc,
                            *, num_heads, head_dim, half_window, tq, tkv):
    b = pl.program_id(0)
    qi = pl.program_id(1)
    s = pl.program_id(2)
    nq = pl.num_programs(1)
    nk = pl.num_programs(2)

    @pl.when(s == 0)
    def _init():
        m_sc[...] = jnp.full(m_sc.shape, -1e30, jnp.float32)
        l_sc[...] = jnp.zeros_like(l_sc)
        acc_sc[...] = jnp.zeros_like(acc_sc)

    @pl.when(s < cnt_ref[b * nq + qi])
    def _compute():
        ki = tbl_ref[(b * nq + qi) * nk + s]
        # sliding-window + global + key-padding mask, generated in-kernel.
        q_pos = qi * tq + lax.broadcasted_iota(jnp.int32, (tq, tkv), 0)
        k_pos = ki * tkv + lax.broadcasted_iota(jnp.int32, (tq, tkv), 1)
        band = jnp.abs(q_pos - k_pos) <= half_window
        gq = gq_ref[0] > 0.5                     # (tq, 1)
        gk = gk_ref[0] > 0.5                     # (1, tkv)
        kp = kp_ref[0] > 0.5                     # (1, tkv)
        allowed = jnp.logical_and(
            jnp.logical_or(band, jnp.logical_or(gq, gk)), kp)
        bias = jnp.where(allowed, 0.0, -1e9).astype(jnp.float32)

        # NOTE: Python-unrolled head loop; switch to lax.fori_loop if H >= ~12
        #       and the bundle dump shows vreg spills.
        for h in range(num_heads):
            qh = q_ref[h, 0]                     # (tq, dh) bf16, 1/sqrt(dh) pre-folded
            kh = k_ref[h, 0]                     # (tkv, dh)
            vh = v_ref[h, 0]                     # (tkv, dh)
            sc = lax.dot_general(qh, kh, (((1,), (1,)), ((), ())),
                                 preferred_element_type=jnp.float32) + bias
            m_prev = m_sc[h]                     # (tq, 1)
            m_new = jnp.maximum(m_prev, jnp.max(sc, axis=-1, keepdims=True))
            alpha = jnp.exp(m_prev - m_new)
            p = jnp.exp(sc - m_new)
            l_sc[h] = alpha * l_sc[h] + jnp.sum(p, axis=-1, keepdims=True)
            acc_sc[h] = alpha * acc_sc[h] + jnp.dot(
                p.astype(vh.dtype), vh, preferred_element_type=jnp.float32)
            m_sc[h] = m_new

    @pl.when(s == nk - 1)
    def _fin():
        inv = 1.0 / l_sc[...]                    # exact; once per q tile
        merged = jnp.concatenate(
            [acc_sc[h] * inv[h] for h in range(num_heads)], axis=-1)
        o_ref[0] = merged.astype(o_ref.dtype)    # lane-dense (tq, D) store


def longformer_attention(qkv, table, count, gq, gk, kp, *, B, S, H, dh,
                         half_window, tq, tkv):
    """qkv: [3H, B, S, dh] bf16 (Q pre-scaled). Returns [B, S, D] bf16."""
    D = H * dh
    nq, nk = S // tq, S // tkv

    def kv_idx(b, qi, s, tbl):
        return tbl[(b * nq + qi) * nk + s]

    kern = functools.partial(_flash_band_attn_kernel, num_heads=H, head_dim=dh,
                             half_window=half_window, tq=tq, tkv=tkv)
    grid_spec = pltpu.PrefetchScalarGridSpec(
        num_scalar_prefetch=2,
        grid=(B, nq, nk),
        in_specs=[
            pl.BlockSpec((H, 1, tq, dh),
                         lambda b, qi, s, tbl, cnt: (0, b, qi, 0)),
            pl.BlockSpec((H, 1, tkv, dh),
                         lambda b, qi, s, tbl, cnt: (1, b, kv_idx(b, qi, s, tbl), 0)),
            pl.BlockSpec((H, 1, tkv, dh),
                         lambda b, qi, s, tbl, cnt: (2, b, kv_idx(b, qi, s, tbl), 0)),
            pl.BlockSpec((1, tq, 1),
                         lambda b, qi, s, tbl, cnt: (b, qi, 0)),
            pl.BlockSpec((1, 1, tkv),
                         lambda b, qi, s, tbl, cnt: (b, 0, kv_idx(b, qi, s, tbl))),
            pl.BlockSpec((1, 1, tkv),
                         lambda b, qi, s, tbl, cnt: (b, 0, kv_idx(b, qi, s, tbl))),
        ],
        out_specs=pl.BlockSpec((1, tq, D), lambda b, qi, s, tbl, cnt: (b, qi, 0)),
        scratch_shapes=[
            pltpu.VMEM((H, tq, 1), jnp.float32),     # running max
            pltpu.VMEM((H, tq, 1), jnp.float32),     # running denom
            pltpu.VMEM((H, tq, dh), jnp.float32),    # per-head accumulator
        ],
    )
    return pl.pallas_call(
        kern,
        out_shape=jax.ShapeDtypeStruct((B, S, D), jnp.bfloat16),
        grid_spec=grid_spec,
        compiler_params=pltpu.CompilerParams(
            dimension_semantics=("parallel", "parallel", "arbitrary"),
            vmem_limit_bytes=_VMEM_LIMIT),
    )(table, count, qkv, qkv, qkv, gq, gk, kp)


# ----------------------------- params --------------------------------------

def init_params(key, *, vocab_size, d_model, num_layers, max_pos):
    inter = 4 * d_model
    keys = iter(jax.random.split(key, 8 + num_layers * 6 + 2))
    std = 0.02

    def w(shape):
        return (std * jax.random.normal(next(keys), shape)).astype(jnp.float32)

    params = {
        "word_emb": w((vocab_size, d_model)),
        "pos_emb": w((max_pos, d_model)),
        "type_emb": w((1, d_model)),
        "emb_ln_g": jnp.ones((d_model,), jnp.float32),
        "emb_ln_b": jnp.zeros((d_model,), jnp.float32),
        "fc_w": w((d_model, vocab_size)),
        "fc_b": jnp.zeros((vocab_size,), jnp.float32),
        "layers": [],
    }
    for _ in range(num_layers):
        params["layers"].append({
            "q_w": w((d_model, d_model)), "q_b": jnp.zeros((d_model,), jnp.float32),
            "k_w": w((d_model, d_model)), "k_b": jnp.zeros((d_model,), jnp.float32),
            "v_w": w((d_model, d_model)), "v_b": jnp.zeros((d_model,), jnp.float32),
            "o_w": w((d_model, d_model)), "o_b": jnp.zeros((d_model,), jnp.float32),
            "ln1_g": jnp.ones((d_model,), jnp.float32),
            "ln1_b": jnp.zeros((d_model,), jnp.float32),
            "i_w": w((d_model, inter)), "i_b": jnp.zeros((inter,), jnp.float32),
            "f_w": w((inter, d_model)), "f_b": jnp.zeros((d_model,), jnp.float32),
            "ln2_g": jnp.ones((d_model,), jnp.float32),
            "ln2_b": jnp.zeros((d_model,), jnp.float32),
        })
    return params


def prepare_params(params, cfg):
    """One-time weight preparation (NOT per forward): bf16 casts, per-head QKV
    packing with 1/sqrt(dh) folded into Q, vocab padded to a 128 multiple."""
    D = cfg["d_model"]
    H = cfg["num_attention_heads"]
    dh = D // H
    inv_scale = 1.0 / math.sqrt(dh)
    vocab = params["fc_w"].shape[1]
    n_pad = _round_up(vocab, 128)

    def heads_leading(wmat):  # [D, D] -> [H, D, dh]
        return jnp.transpose(wmat.reshape(D, H, dh), (1, 0, 2))

    layers = []
    for lyr in params["layers"]:
        wqkv = jnp.concatenate(
            [heads_leading(lyr["q_w"] * inv_scale),
             heads_leading(lyr["k_w"]),
             heads_leading(lyr["v_w"])], axis=0).astype(jnp.bfloat16)
        bqkv = jnp.concatenate(
            [(lyr["q_b"] * inv_scale).reshape(H, 1, dh),
             lyr["k_b"].reshape(H, 1, dh),
             lyr["v_b"].reshape(H, 1, dh)], axis=0).astype(jnp.float32)
        layers.append({
            "wqkv": wqkv, "bqkv": bqkv,
            "o_w": lyr["o_w"].astype(jnp.bfloat16),
            "o_b": lyr["o_b"].reshape(1, D).astype(jnp.float32),
            "ln1_g": lyr["ln1_g"].reshape(1, D).astype(jnp.float32),
            "ln1_b": lyr["ln1_b"].reshape(1, D).astype(jnp.float32),
            "i_w": lyr["i_w"].astype(jnp.bfloat16),
            "i_b": lyr["i_b"].reshape(1, -1).astype(jnp.float32),
            "f_w": lyr["f_w"].astype(jnp.bfloat16),
            "f_b": lyr["f_b"].reshape(1, D).astype(jnp.float32),
            "ln2_g": lyr["ln2_g"].reshape(1, D).astype(jnp.float32),
            "ln2_b": lyr["ln2_b"].reshape(1, D).astype(jnp.float32),
        })

    return {
        "word_emb": params["word_emb"],
        "pos_emb": params["pos_emb"],
        "type_emb": params["type_emb"],
        "emb_ln_g": params["emb_ln_g"].reshape(1, D).astype(jnp.float32),
        "emb_ln_b": params["emb_ln_b"].reshape(1, D).astype(jnp.float32),
        # TODO(synk): consider int8 fc_w on v6e (fp8 on v7x) for the vocab matmul.
        "fc_w": jnp.pad(params["fc_w"],
                        ((0, 0), (0, n_pad - vocab))).astype(jnp.bfloat16),
        "fc_b": jnp.pad(params["fc_b"],
                        (0, n_pad - vocab)).reshape(1, n_pad).astype(jnp.float32),
        "vocab": vocab,
        "layers": layers,
    }


# ----------------------------- model forward --------------------------------

def longformer_mlm_forward(prep, x, attention_mask, global_attention_mask, cfg):
    B, S = x.shape
    D = cfg["d_model"]
    H = cfg["num_attention_heads"]
    dh = D // H
    M = B * S
    half_window = cfg["attention_window"] // 2

    # ---- embeddings (gathers stay in XLA; LayerNorm is a Pallas kernel) ----
    # TODO(synk): HF RoBERTa/Longformer uses padding_idx for positions; we keep
    #             the pad_token_id offset used by the previous implementation.
    am = attention_mask.astype(jnp.int32)
    pos_ids = (jnp.cumsum(am, axis=1) * am + cfg["pad_token_id"]).astype(jnp.int32)
    emb = (jnp.take(prep["word_emb"], x, axis=0)
           + jnp.take(prep["pos_emb"], pos_ids, axis=0)
           + prep["type_emb"][0][None, None, :])
    h = layernorm(emb.reshape(M, D), prep["emb_ln_g"], prep["emb_ln_b"])  # bf16

    # ---- attention schedule + thin masks: same for every layer, built once ----
    tq = _fit(S, 128)
    tkv = _fit(S, 256)
    table, count = build_attention_schedule(
        global_attention_mask, S=S, tq=tq, tkv=tkv, half_window=half_window)
    glob_f = global_attention_mask.astype(jnp.float32)
    gq = glob_f.reshape(B, S, 1)
    gk = glob_f.reshape(B, 1, S)
    kp = attention_mask.astype(jnp.float32).reshape(B, 1, S)

    # ---- encoder layers ----
    for lyr in prep["layers"]:
        qkv = qkv_project(h, lyr["wqkv"], lyr["bqkv"], B=B, S=S)   # [3H, B, S, dh]
        ctx = longformer_attention(qkv, table, count, gq, gk, kp,
                                   B=B, S=S, H=H, dh=dh,
                                   half_window=half_window, tq=tq, tkv=tkv)
        h = fused_linear_ln(ctx.reshape(M, D), lyr["o_w"], lyr["o_b"],
                            residual=h, gamma=lyr["ln1_g"], beta=lyr["ln1_b"])
        inter = fused_linear(h, lyr["i_w"], lyr["i_b"], activation="gelu")
        h = fused_linear_ln(inter, lyr["f_w"], lyr["f_b"],
                            residual=h, gamma=lyr["ln2_g"], beta=lyr["ln2_b"])

    last_hidden_state = h.astype(jnp.float32).reshape(B, S, D)
    logits_pad = vocab_projection(h, prep["fc_w"], prep["fc_b"])
    logits = logits_pad[:, :prep["vocab"]].reshape(B, S, prep["vocab"])
    # TODO(synk): `global_attentions` output of HF Longformer is not reproduced.
    return {"logits": logits, "last_hidden_state": last_hidden_state}


# ----------------------------------- main -----------------------------------

if __name__ == "__main__":
    token_names = ["[PAD]", "[CLS]", "[MASK]", "[UNK]"] + [f"tok{i}" for i in range(12)]
    token_map = {t: {"id": i} for i, t in enumerate(token_names)}
    vocab_size = len(token_map)

    cfg = {
        "d_model": 32,
        "attention_window": 8,
        "max_seq_len": 16,
        "num_attention_heads": 4,
        "num_hidden_layers": 2,
        "num_global_tokens": 1,
        "pad_token_id": token_map["[PAD]"]["id"],
    }

    key = jax.random.PRNGKey(0)
    pkey, xkey = jax.random.split(key)
    params = init_params(
        pkey,
        vocab_size=vocab_size,
        d_model=cfg["d_model"],
        num_layers=cfg["num_hidden_layers"],
        max_pos=cfg["max_seq_len"] + 2,
    )
    prep = prepare_params(params, cfg)
    jax.block_until_ready(prep["fc_w"])

    B, S = 2, cfg["max_seq_len"]
    x = jax.random.randint(xkey, (B, S), 4, vocab_size, dtype=jnp.int32)
    x = x.at[:, 0].set(token_map["[CLS]"]["id"])
    x = x.at[0, 5].set(token_map["[MASK]"]["id"])

    attention_mask = jnp.ones((B, S), jnp.int32).at[1, -2:].set(0)
    x = x * attention_mask  # padded positions -> [PAD]
    global_attention_mask = jnp.zeros((B, S), jnp.int32)
    global_attention_mask = global_attention_mask.at[:, :cfg["num_global_tokens"]].set(1)

    out = longformer_mlm_forward(prep, x, attention_mask, global_attention_mask, cfg)
    jax.block_until_ready(out["logits"])
    jax.block_until_ready(out["last_hidden_state"])

    assert out["logits"].shape == (B, S, vocab_size)
    assert out["last_hidden_state"].shape == (B, S, cfg["d_model"])
    assert bool(jnp.all(jnp.isfinite(out["logits"])))
    assert bool(jnp.all(jnp.isfinite(out["last_hidden_state"])))
    print("KERNEL_OK")
</pallas_src>

<mosaic_0001>
module attributes {stable_mosaic.version = 11 : i64} {
  func.func @_ln_kernel(%arg0: i32, %arg1: memref<32x32xf32, #tpu.memory_space<vmem>>, %arg2: memref<1x32xf32, #tpu.memory_space<vmem>>, %arg3: memref<1x32xf32, #tpu.memory_space<vmem>>, %arg4: memref<32x32xbf16, #tpu.memory_space<vmem>>) attributes {dimension_semantics = [#tpu.dimension_semantics<parallel>], iteration_bounds = array<i64: 1>, scalar_prefetch = 0 : i64, scratch_operands = 0 : i64, tpu.core_type = #tpu.core_type<tc>, window_params = [{transform_indices = @transform_0, window_bounds = array<i64: 32, 32>}, {pipeline_mode = #tpu.pipeline_mode<synchronous>, transform_indices = @transform_1, window_bounds = array<i64: 1, 32>}, {pipeline_mode = #tpu.pipeline_mode<synchronous>, transform_indices = @transform_2, window_bounds = array<i64: 1, 32>}, {transform_indices = @transform_3, window_bounds = array<i64: 32, 32>}]} {
    %c0 = arith.constant 0 : index
    %c0_0 = arith.constant 0 : index
    %0 = vector.load %arg1[%c0, %c0_0] : memref<32x32xf32, #tpu.memory_space<vmem>>, vector<32x32xf32>
    %cst = arith.constant dense<0.000000e+00> : vector<32xf32>
    %1 = vector.multi_reduction <add>, %0, %cst [1] : vector<32x32xf32> to vector<32xf32>
    %2 = vector.shape_cast %1 : vector<32xf32> to vector<32x1xf32>
    %cst_1 = arith.constant 3.200000e+01 : f32
    %3 = vector.broadcast %cst_1 : f32 to vector<32x1xf32>
    %4 = arith.divf %2, %3 : vector<32x1xf32>
    %5 = vector.broadcast %4 : vector<32x1xf32> to vector<32x32xf32>
    %6 = arith.subf %0, %5 : vector<32x32xf32>
    %7 = arith.mulf %6, %6 : vector<32x32xf32>
    %cst_2 = arith.constant dense<0.000000e+00> : vector<32xf32>
    %8 = vector.multi_reduction <add>, %7, %cst_2 [1] : vector<32x32xf32> to vector<32xf32>
    %9 = vector.shape_cast %8 : vector<32xf32> to vector<32x1xf32>
    %cst_3 = arith.constant 3.200000e+01 : f32
    %10 = vector.broadcast %cst_3 : f32 to vector<32x1xf32>
    %11 = arith.divf %9, %10 : vector<32x1xf32>
    %12 = vector.broadcast %4 : vector<32x1xf32> to vector<32x32xf32>
    %13 = arith.subf %0, %12 : vector<32x32xf32>
    %cst_4 = arith.constant 9.99999996E-13 : f32
    %14 = vector.broadcast %cst_4 : f32 to vector<32x1xf32>
    %15 = arith.addf %11, %14 : vector<32x1xf32>
    %16 = math.rsqrt %15 : vector<32x1xf32>
    %17 = vector.broadcast %16 : vector<32x1xf32> to vector<32x32xf32>
    %18 = arith.mulf %13, %17 : vector<32x32xf32>
    %c0_5 = arith.constant 0 : index
    %c0_6 = arith.constant 0 : index
    %19 = vector.load %arg2[%c0_5, %c0_6] : memref<1x32xf32, #tpu.memory_space<vmem>>, vector<1x32xf32>
    %20 = vector.broadcast %19 : vector<1x32xf32> to vector<32x32xf32>
    %21 = arith.mulf %18, %20 : vector<32x32xf32>
    %c0_7 = arith.constant 0 : index
    %c0_8 = arith.constant 0 : index
    %22 = vector.load %arg3[%c0_7, %c0_8] : memref<1x32xf32, #tpu.memory_space<vmem>>, vector<1x32xf32>
    %23 = vector.broadcast %22 : vector<1x32xf32> to vector<32x32xf32>
    %24 = arith.addf %21, %23 : vector<32x32xf32>
    %25 = arith.truncf %24 : vector<32x32xf32> to vector<32x32xbf16>
    %c0_9 = arith.constant 0 : index
    %c0_10 = arith.constant 0 : index
    %26 = vector.load %arg4[%c0_9, %c0_10] : memref<32x32xbf16, #tpu.memory_space<vmem>>, vector<32x32xbf16>
    tpu.vector_store %arg4[%c0_9, %c0_10], %25 {strides = array<i32>} : memref<32x32xbf16, #tpu.memory_space<vmem>>, vector<32x32xbf16>,
    return
  }
  func.func @transform_0(%arg0: i32) -> (i32, i32) {
    %c0_i32 = arith.constant 0 : i32
    %c0_i32_0 = arith.constant 0 : i32
    return %arg0, %c0_i32 : i32, i32
  }
  func.func @transform_1(%arg0: i32) -> (i32, i32) {
    %c0_i32 = arith.constant 0 : i32
    %c0_i32_0 = arith.constant 0 : i32
    %c0_i32_1 = arith.constant 0 : i32
    return %c0_i32, %c0_i32_0 : i32, i32
  }
  func.func @transform_2(%arg0: i32) -> (i32, i32) {
    %c0_i32 = arith.constant 0 : i32
    %c0_i32_0 = arith.constant 0 : i32
    %c0_i32_1 = arith.constant 0 : i32
    return %c0_i32, %c0_i32_0 : i32, i32
  }
  func.func @transform_3(%arg0: i32) -> (i32, i32) {
    %c0_i32 = arith.constant 0 : i32
    %c0_i32_0 = arith.constant 0 : i32
    return %arg0, %c0_i32 : i32, i32
  }
}

</mosaic_0001>

<llo_original>
// kernel: tpu_custom_call.1
$region0: #{tpu_custom_call.1}
  #allocation0 [shape = 'u32[]', space=smem, size = 0x4, offset = 0x4, fixed_abs, tag = 'smem constant byte address 0x4 - core index']
  #allocation1 [shape = 'u32[144,128]{1,0:T(1,128)}', space=vmem, size = 0x12000, scoped, tag = 'internal scratch']
  %s0 = inlined_call_operand.hbm [shape: f32[32,32], index: 0, kind: input, shape index: {}]
  %s1 = inlined_call_operand.vmem [shape: f32[1,32], index: 1, kind: input, shape index: {}]
  %s2 = inlined_call_operand.vmem [shape: f32[1,32], index: 2, kind: input, shape index: {}]
  %s3 = inlined_call_operand.hbm [shape: bf16[32,32], index: 3, kind: output, shape index: {}]
  %s4 = sld [smem:[#allocation0]]
  $region26: #{tpu_custom_call.1} parent=0
    _
  %s6 = ssub.s32 1, %s4
  %s7 = scalar_select 0, %s6, %s4
  $region1: #{tpu_custom_call.1} parent=0
    #allocation2 [shape = 'u8[16384]{0}', space=vmem, size = 0x4000, scoped, tag = 'input window, operand 0, single buffered']
    #allocation3 [shape = 's32[1]{0}', space=sflag, size = 0x4, scoped, tag = 'scoped memory for tpu_custom_call.1']
    #allocation4 [shape = 's32[1]{0}', space=sflag, size = 0x4, scoped, tag = 'scoped memory for tpu_custom_call.1']
    #allocation5 [shape = 'u8[8192]{0}', space=vmem, size = 0x2000, scoped, tag = 'output window, operand 0, single buffered']
    %8 = vsyncpa [#allocation3], 0
    %9 = vsyncpa [#allocation4], 0
    // Predicated region
    $region2: #{tpu_custom_call.1} parent=1 // pred_check
      _
    $region3: #{tpu_custom_call.1} parent=1 // pred_check_branch
      %11 = sbr.rel (0) target = $region5
    $region4: #{tpu_custom_call.1} parent=1 // pred_region
      %s13 = ssub.s32 512, 512
      %14 = vsyncadd [#allocation3], %s13
      %s15 = sshll.u32 [#allocation2], 4
      %s16 = int_to_ptr.vmem [resolvable:$true] %s15
      %21 = dma.hbm_to_vmem [thread:$0]  %s0, 512, %s16, [#allocation3], 128, 128, 8
    $region5: #{tpu_custom_call.1} parent=1 // pred_fallthru
      _
    // Predicated region
    $region6: #{tpu_custom_call.1} parent=1 // pred_check
      _
    $region7: #{tpu_custom_call.1} parent=1 // pred_check_branch
      %23 = sbr.rel (0) target = $region9
    $region8: #{tpu_custom_call.1} parent=1 // pred_region
      _
    $region9: #{tpu_custom_call.1} parent=1 // pred_fallthru
      _
    // Predicated region
    $region10: #{tpu_custom_call.1} parent=1 // pred_check
      _
    $region11: #{tpu_custom_call.1} parent=1 // pred_check_branch
      %25 = sbr.rel (0) target = $region13
    $region12: #{tpu_custom_call.1} parent=1 // pred_region
      _
    $region13: #{tpu_custom_call.1} parent=1 // pred_fallthru
      _
    // Predicated region
    $region14: #{tpu_custom_call.1} parent=1 // pred_check
      _
    $region15: #{tpu_custom_call.1} parent=1 // pred_check_branch
      %27 = sbr.rel (0) target = $region17
    $region16: #{tpu_custom_call.1} parent=1 // pred_region
      %28 = dma.done [#allocation3], 512
    $region17: #{tpu_custom_call.1} parent=1 // pred_fallthru
      _
    %v29 = vld [vmem:[#allocation2] sm:$0xff]
    %v30 = vld [vmem:[#allocation2 + $0x8] sm:$0xff]
    %v31 = vld [vmem:[#allocation2 + $0x10] sm:$0xff]
    %v32 = vld [vmem:[#allocation2 + $0x18] sm:$0xff]
    %vm33 = vcmask 261120
    %v34 = vsel %vm33, %v29, 0.0
    %35 = vadd.xlane.f32.xlu0 %v34
    %v36 = vpop.xlane.xlu0 %35
    %v37 = vsel %vm33, %v30, 0.0
    %38 = vadd.xlane.f32.xlu0 %v37
    %v39 = vpop.xlane.xlu0 %38
    %v40 = vsel %vm33, %v31, 0.0
    %41 = vadd.xlane.f32.xlu0 %v40
    %v42 = vpop.xlane.xlu0 %41
    %v43 = vsel %vm33, %v32, 0.0
    %44 = vadd.xlane.f32.xlu0 %v43
    %v45 = vpop.xlane.xlu0 %44
    %v46 = vrcp.pop 32.0
    %v47 = vmul.f32 %v36, %v46
    %v48 = vmul.f32 %v39, %v46
    %v49 = vmul.f32 %v42, %v46
    %v50 = vmul.f32 %v45, %v46
    %v51 = vsub.f32 %v29, %v47
    %v52 = vsub.f32 %v30, %v48
    %v53 = vsub.f32 %v31, %v49
    %v54 = vsub.f32 %v32, %v50
    %v55 = vmul.f32 %v51, %v51
    %v56 = vmul.f32 %v52, %v52
    %v57 = vmul.f32 %v53, %v53
    %v58 = vmul.f32 %v54, %v54
    %v59 = vsel %vm33, %v55, 0.0
    %60 = vadd.xlane.f32.xlu0 %v59
    %v61 = vpop.xlane.xlu0 %60
    %v62 = vsel %vm33, %v56, 0.0
    %63 = vadd.xlane.f32.xlu0 %v62
    %v64 = vpop.xlane.xlu0 %63
    %v65 = vsel %vm33, %v57, 0.0
    %66 = vadd.xlane.f32.xlu0 %v65
    %v67 = vpop.xlane.xlu0 %66
    %v68 = vsel %vm33, %v58, 0.0
    %69 = vadd.xlane.f32.xlu0 %v68
    %v70 = vpop.xlane.xlu0 %69
    %v71 = vmul.f32 %v61, %v46
    %v72 = vmul.f32 %v64, %v46
    %v73 = vmul.f32 %v67, %v46
    %v74 = vmul.f32 %v70, %v46
    %v75 = vadd.f32 %v71, 1e-12
    %v76 = vadd.f32 %v72, 1e-12
    %v77 = vadd.f32 %v73, 1e-12
    %v78 = vadd.f32 %v74, 1e-12
    %v79 = vrsqrt.pop %v75
    %v80 = vrsqrt.pop %v76
    %v81 = vrsqrt.pop %v77
    %v82 = vrsqrt.pop %v78
    %v83 = vmul.f32 %v51, %v79
    %v84 = vmul.f32 %v52, %v80
    %v85 = vmul.f32 %v53, %v81
    %v86 = vmul.f32 %v54, %v82
    %v87 = vld [vmem:[%s1] sm:$0x1]
    %v89 = vlaneseq
    %v90 = vshrl.u32 %v89, 7
    %v91 = vsub.s32 0, %v90
    %v92 = vrot.slane %v87, %v91
    %v94 = vmul.f32 %v83, %v92
    %v95 = vmul.f32 %v84, %v92
    %v96 = vmul.f32 %v85, %v92
    %v97 = vmul.f32 %v86, %v92
    %v98 = vld [vmem:[%s2] sm:$0x1]
    %v100 = vlaneseq
    %v101 = vshrl.u32 %v100, 7
    %v102 = vsub.s32 0, %v101
    %v103 = vrot.slane %v98, %v102
    %v105 = vadd.f32 %v94, %v103
    %v106 = vadd.f32 %v95, %v103
    %v107 = vadd.f32 %v96, %v103
    %v108 = vadd.f32 %v97, %v103
    %v109 = vpack.c.bf16 %v106, %v105
    %v110 = vpack.c.bf16 %v108, %v107
    %v113 = vunpack.c.l.b16 %v109
    %v114 = vunpack.c.h.b16 %v109
    %v115 = vunpack.c.l.b16 %v110
    %v116 = vunpack.c.h.b16 %v110
    %v117 = vpack.c.b16 %v113, %v113
    %v118 = vpack.c.b16 %v114, %v114
    %v119 = vpack.c.b16 %v115, %v115
    %v120 = vpack.c.b16 %v116, %v116
    %vm125 = vcmask 257024
    %126 = vst.msk [vmem:[#allocation5] sm:$0xf] %vm125, %v117
    %127 = vst.msk [vmem:[#allocation5 + $0x4] sm:$0xf] %vm125, %v118
    %128 = vst.msk [vmem:[#allocation5 + $0x8] sm:$0xf] %vm125, %v119
    %129 = vst.msk [vmem:[#allocation5 + $0xc] sm:$0xf] %vm125, %v120
    // Predicated region
    $region18: #{tpu_custom_call.1} parent=1 // pred_check
      _
    $region19: #{tpu_custom_call.1} parent=1 // pred_check_branch
      %131 = sbr.rel (0) target = $region21
    $region20: #{tpu_custom_call.1} parent=1 // pred_region
      %s133 = ssub.s32 256, 256
      %134 = vsyncadd [#allocation4], %s133
      %s135 = sshll.u32 [#allocation5], 4
      %s136 = int_to_ptr.vmem [resolvable:$true] %s135
      %141 = dma.vmem_to_hbm [thread:$0]  %s136, 256, %s3, [#allocation4], 64, 64, 4
    $region21: #{tpu_custom_call.1} parent=1 // pred_fallthru
      _
    // Predicated region
    $region22: #{tpu_custom_call.1} parent=1 // pred_check
      _
    $region23: #{tpu_custom_call.1} parent=1 // pred_check_branch
      %143 = sbr.rel (0) target = $region25
    $region24: #{tpu_custom_call.1} parent=1 // pred_region
      %144 = dma.done [#allocation4], 256
    $region25: #{tpu_custom_call.1} parent=1 // pred_fallthru
      _
    %145 = vsyncpa [#allocation3], 1
    %146 = vsyncpa [#allocation4], 1

</llo_original>
